<compile_context>
chip_gen: v5e
topology: v5e:2x2
jax: 0.10.0
libtpu: 0.0.40
codegen_flags: <defaults>
</compile_context>

<pallas_src>
import functools

import jax
import jax.numpy as jnp
from jax.experimental import pallas as pl
from jax.experimental.pallas import tpu as pltpu


def _round_up(x, m):
    return (x + m - 1) // m * m


def _conv_bn_relu_kernel(x_hbm, w_ref, b_ref, o_ref, xbuf, sem, *,
                         kh, kw, wp_pad, m_tile, t_halo, rows_per_image):
    # x_hbm: (N*rows_per_image, Cin)  bf16 zero-padded slab, left in HBM (pl.ANY)
    # w_ref: (kh*kw*Cin, TN)          bf16 BN-folded weight (resident across n, m)
    # b_ref: (1, TN)                  f32 folded BN bias
    # o_ref: (1, m_tile, TN)          bf16 stride-1 output row tile (lane dense)
    # xbuf : (t_halo, Cin)            VMEM scratch: current row tile + halo
    n = pl.program_id(1)
    m = pl.program_id(2)

    # Fetch this tile's input rows (+ halo) from HBM.  row0 is 8-aligned since
    # rows_per_image and m_tile are multiples of 8.
    row0 = pl.multiple_of(n * rows_per_image + m * m_tile, 8)
    cp = pltpu.make_async_copy(x_hbm.at[pl.ds(row0, t_halo), :], xbuf, sem)
    cp.start()
    cp.wait()

    # In-VMEM im2col for this tile: tap (ki, kj) is the static row shift
    # ki*wp_pad + kj; concatenate the kh*kw shifted (m_tile, Cin) slices along
    # the lane axis so a single matmul contracts over K = kh*kw*Cin.
    taps = []
    for ki in range(kh):
        for kj in range(kw):
            sh = ki * wp_pad + kj
            taps.append(xbuf[sh:sh + m_tile, :])
    a = taps[0] if len(taps) == 1 else jnp.concatenate(taps, axis=-1)

    acc = jnp.dot(a, w_ref[...], preferred_element_type=jnp.float32)
    y = acc + b_ref[...]
    o_ref[0] = jnp.maximum(y, 0.0).astype(o_ref.dtype)


@functools.partial(jax.jit,
                   static_argnames=("kernel_size", "stride", "padding", "m_tile"))
def conv_bn_relu(x_nchw, weight_oihw, gamma, beta, running_mean, running_var,
                 kernel_size, stride, padding, eps=1e-5, m_tile=512):
    N, Cin, H, W = x_nchw.shape
    Cout = weight_oihw.shape[0]
    kh = kw = kernel_size
    s = stride
    TN = 128

    Hp, Wp = H + 2 * padding, W + 2 * padding
    OH = (Hp - kh) // s + 1
    OW = (Wp - kw) // s + 1
    OH1 = Hp - kh + 1                       # stride-1 output height
    Wp_pad = _round_up(Wp, 8)               # 8-aligned row pitch
    M1 = OH1 * Wp_pad                       # stride-1 rows incl. right-margin garbage cols
    halo = (kh - 1) * Wp_pad + (kw - 1)

    m_tile = _round_up(min(m_tile, _round_up(M1, 16)), 16)
    num_m = -(-M1 // m_tile)
    t_halo = _round_up(m_tile + halo, 8)            # rows DMA'd per step
    rows_per_image = (num_m - 1) * m_tile + t_halo  # multiple of 8, >= Hp*Wp_pad

    # ---- glue: NCHW -> flattened, zero-padded, 8-pitch NHWC slab (bf16) ----
    x_nhwc = jnp.transpose(x_nchw, (0, 2, 3, 1))
    x_pad = jnp.pad(x_nhwc, ((0, 0), (padding, padding),
                             (padding, padding + (Wp_pad - Wp)), (0, 0)))
    x_slab = x_pad.reshape(N, Hp * Wp_pad, Cin)
    x_slab = jnp.pad(x_slab, ((0, 0), (0, rows_per_image - Hp * Wp_pad), (0, 0)))
    x_slab = x_slab.reshape(N * rows_per_image, Cin).astype(jnp.bfloat16)

    # ---- fold BN (eval mode) into weight/bias in f32, then cast to bf16 ----
    scale = gamma / jnp.sqrt(running_var + eps)                   # (Cout,)
    bias = beta - running_mean * scale                            # (Cout,)
    K = kh * kw * Cin
    w2d = jnp.transpose(weight_oihw, (2, 3, 1, 0)).reshape(K, Cout)
    w2d = (w2d * scale[None, :]).astype(jnp.bfloat16)

    Cp = _round_up(Cout, TN)
    if Cp > Cout:
        w2d = jnp.pad(w2d, ((0, 0), (0, Cp - Cout)))
        bias = jnp.pad(bias, (0, Cp - Cout))
    bias2d = bias.reshape(1, Cp).astype(jnp.float32)

    kernel = functools.partial(
        _conv_bn_relu_kernel, kh=kh, kw=kw, wp_pad=Wp_pad, m_tile=m_tile,
        t_halo=t_halo, rows_per_image=rows_per_image)

    flops = 2 * N * num_m * m_tile * K * Cp
    bytes_accessed = (N * num_m * (Cp // TN) * t_halo * Cin * 2     # x tile reads
                      + K * Cp * 2 + 4 * Cp                         # resident weight/bias
                      + N * num_m * m_tile * Cp * 2)                # output writeback
    per_step_vmem = (2 * (K * TN * 2 + TN * 4 + m_tile * TN * 2)    # double-buffered blocks
                     + t_halo * Cin * 2 + m_tile * TN * 4)          # xbuf + f32 acc
    vmem_limit = int(min(64 * 2**20, max(32 * 2**20, 2 * per_step_vmem)))

    out_slab = pl.pallas_call(
        kernel,
        out_shape=jax.ShapeDtypeStruct((N, num_m * m_tile, Cp), jnp.bfloat16),
        grid=(Cp // TN, N, num_m),
        in_specs=[
            pl.BlockSpec(memory_space=pl.ANY),                      # x slab stays in HBM
            pl.BlockSpec((K, TN), lambda j, n, m: (0, j)),
            pl.BlockSpec((1, TN), lambda j, n, m: (0, j)),
        ],
        out_specs=pl.BlockSpec((1, m_tile, TN), lambda j, n, m: (n, m, j)),
        scratch_shapes=[
            pltpu.VMEM((t_halo, Cin), jnp.bfloat16),
            pltpu.SemaphoreType.DMA,
        ],
        compiler_params=pltpu.CompilerParams(
            dimension_semantics=("parallel", "parallel", "parallel"),
            vmem_limit_bytes=vmem_limit),
        cost_estimate=pl.CostEstimate(
            flops=flops, transcendentals=0, bytes_accessed=bytes_accessed),
    )(x_slab, w2d, bias2d)

    # ---- drop garbage cols / padded channels, apply stride, back to NCHW ----
    # TODO(synk): stride > 1 computes the full stride-1 result and subsamples
    # here (~stride^2 extra work); an in-kernel strided store would avoid it.
    out = out_slab[:, :M1, :].reshape(N, OH1, Wp_pad, Cp)
    out = out[:, ::s, ::s, :][:, :OH, :OW, :Cout]
    return jnp.transpose(out, (0, 3, 1, 2)).astype(x_nchw.dtype)


def _reference(x_nchw, weight_oihw, gamma, beta, running_mean, running_var,
               stride, padding, eps=1e-5):
    y = jax.lax.conv_general_dilated(
        x_nchw, weight_oihw,
        window_strides=(stride, stride),
        padding=((padding, padding), (padding, padding)),
        dimension_numbers=("NCHW", "OIHW", "NCHW"),
    )
    scale = (gamma / jnp.sqrt(running_var + eps)).reshape(1, -1, 1, 1)
    bias = (beta - running_mean * gamma / jnp.sqrt(running_var + eps)).reshape(1, -1, 1, 1)
    return jnp.maximum(y * scale + bias, 0.0)


if __name__ == "__main__":
    # ConvBnRelu(in_planes=4, out_planes=8, kernel_size=3, stride=1, padding=1)
    N, Cin, H, W = 2, 4, 16, 16
    Cout, ksize, stride, padding = 8, 3, 1, 1

    key = jax.random.PRNGKey(0)
    kx, kw_, kg, kb, km, kv = jax.random.split(key, 6)

    x = jax.random.normal(kx, (N, Cin, H, W), dtype=jnp.float32)
    weight = jax.random.normal(kw_, (Cout, Cin, ksize, ksize), dtype=jnp.float32) * 0.1
    gamma = 1.0 + 0.1 * jax.random.normal(kg, (Cout,), dtype=jnp.float32)
    beta = 0.1 * jax.random.normal(kb, (Cout,), dtype=jnp.float32)
    running_mean = 0.1 * jax.random.normal(km, (Cout,), dtype=jnp.float32)
    running_var = jnp.abs(1.0 + 0.1 * jax.random.normal(kv, (Cout,), dtype=jnp.float32))

    # Small m_tile so the demo exercises M-tiling + halo DMA across tile edges.
    out = conv_bn_relu(x, weight, gamma, beta, running_mean, running_var,
                       kernel_size=ksize, stride=stride, padding=padding,
                       m_tile=128)
    out = jax.block_until_ready(out)

    ref = _reference(x, weight, gamma, beta, running_mean, running_var,
                     stride=stride, padding=padding)
    ref = jax.block_until_ready(ref)

    assert out.shape == (N, Cout, H, W), out.shape
    max_err = float(jnp.max(jnp.abs(out - ref)))
    # bf16 activations/weights (f32 accumulation) -> relaxed tolerance.
    assert jnp.allclose(out, ref, atol=5e-2, rtol=5e-2), max_err
    print("KERNEL_OK")
</pallas_src>

<mosaic_0001>
module attributes {stable_mosaic.version = 11 : i64} {
  func.func @_conv_bn_relu_kernel(%arg0: i32, %arg1: i32, %arg2: i32, %arg3: memref<880x4xbf16, #tpu.memory_space<any>>, %arg4: memref<36x128xbf16, #tpu.memory_space<vmem>>, %arg5: memref<1x128xf32, #tpu.memory_space<vmem>>, %arg6: memref<1x128x128xbf16, #tpu.memory_space<vmem>>, %arg7: memref<184x4xbf16, #tpu.memory_space<vmem>>, %arg8: memref<!tpu.dma_semaphore, #tpu.memory_space<semaphore_mem>>) attributes {dimension_semantics = [#tpu.dimension_semantics<parallel>, #tpu.dimension_semantics<parallel>, #tpu.dimension_semantics<parallel>], iteration_bounds = array<i64: 1, 2, 3>, scalar_prefetch = 0 : i64, scratch_operands = 2 : i64, tpu.core_type = #tpu.core_type<tc>, window_params = [{}, {transform_indices = @transform_1, window_bounds = array<i64: 36, 128>}, {transform_indices = @transform_2, window_bounds = array<i64: 1, 128>}, {transform_indices = @transform_3, window_bounds = array<i64: 1, 128, 128>}]} {
    %c440_i32 = arith.constant 440 : i32
    %0 = arith.muli %arg1, %c440_i32 : i32
    %c128_i32 = arith.constant 128 : i32
    %1 = arith.muli %arg2, %c128_i32 : i32
    %2 = arith.addi %0, %1 : i32
    %3 = tpu.assume_multiple %2, 8 : i32
    %c0_i32 = arith.constant 0 : i32
    %4 = tpu.memref_slice %arg3[%3, %c0_i32] : memref<880x4xbf16, #tpu.memory_space<any>> -> memref<184x4xbf16, #tpu.memory_space<any>>
    tpu.enqueue_dma source(%4 : memref<184x4xbf16, #tpu.memory_space<any>>) target(%arg7 : memref<184x4xbf16, #tpu.memory_space<vmem>>) target_semaphore(%arg8 : memref<!tpu.dma_semaphore, #tpu.memory_space<semaphore_mem>>)
    %c0_i32_0 = arith.constant 0 : i32
    %5 = tpu.memref_slice %arg3[%3, %c0_i32_0] : memref<880x4xbf16, #tpu.memory_space<any>> -> memref<184x4xbf16, #tpu.memory_space<any>>
    tpu.wait_dma2 semaphore(%arg8 : memref<!tpu.dma_semaphore, #tpu.memory_space<semaphore_mem>>) src(%5 : memref<184x4xbf16, #tpu.memory_space<any>>) dst(%arg7 : memref<184x4xbf16, #tpu.memory_space<vmem>>)
    %c0 = arith.constant 0 : index
    %c0_1 = arith.constant 0 : index
    %6 = vector.load %arg7[%c0, %c0_1] : memref<184x4xbf16, #tpu.memory_space<vmem>>, vector<128x4xbf16>
    %c1 = arith.constant 1 : index
    %c0_2 = arith.constant 0 : index
    %7 = vector.load %arg7[%c1, %c0_2] : memref<184x4xbf16, #tpu.memory_space<vmem>>, vector<128x4xbf16>
    %c2 = arith.constant 2 : index
    %c0_3 = arith.constant 0 : index
    %8 = vector.load %arg7[%c2, %c0_3] : memref<184x4xbf16, #tpu.memory_space<vmem>>, vector<128x4xbf16>
    %c24 = arith.constant 24 : index
    %c0_4 = arith.constant 0 : index
    %9 = vector.load %arg7[%c24, %c0_4] : memref<184x4xbf16, #tpu.memory_space<vmem>>, vector<128x4xbf16>
    %c25 = arith.constant 25 : index
    %c0_5 = arith.constant 0 : index
    %10 = vector.load %arg7[%c25, %c0_5] : memref<184x4xbf16, #tpu.memory_space<vmem>>, vector<128x4xbf16>
    %c26 = arith.constant 26 : index
    %c0_6 = arith.constant 0 : index
    %11 = vector.load %arg7[%c26, %c0_6] : memref<184x4xbf16, #tpu.memory_space<vmem>>, vector<128x4xbf16>
    %c48 = arith.constant 48 : index
    %c0_7 = arith.constant 0 : index
    %12 = vector.load %arg7[%c48, %c0_7] : memref<184x4xbf16, #tpu.memory_space<vmem>>, vector<128x4xbf16>
    %c49 = arith.constant 49 : index
    %c0_8 = arith.constant 0 : index
    %13 = vector.load %arg7[%c49, %c0_8] : memref<184x4xbf16, #tpu.memory_space<vmem>>, vector<128x4xbf16>
    %c50 = arith.constant 50 : index
    %c0_9 = arith.constant 0 : index
    %14 = vector.load %arg7[%c50, %c0_9] : memref<184x4xbf16, #tpu.memory_space<vmem>>, vector<128x4xbf16>
    %15 = tpu.concatenate %6, %7, %8, %9, %10, %11, %12, %13, %14 in 1 : vector<128x4xbf16>, vector<128x4xbf16>, vector<128x4xbf16>, vector<128x4xbf16>, vector<128x4xbf16>, vector<128x4xbf16>, vector<128x4xbf16>, vector<128x4xbf16>, vector<128x4xbf16> -> vector<128x36xbf16>
    %c0_10 = arith.constant 0 : index
    %c0_11 = arith.constant 0 : index
    %16 = vector.load %arg4[%c0_10, %c0_11] : memref<36x128xbf16, #tpu.memory_space<vmem>>, vector<36x128xbf16>
    %cst = arith.constant dense<0.000000e+00> : vector<128x128xf32>
    %17 = tpu.matmul %15, %16, %cst {dimension_numbers = #tpu.dot_dimension_numbers<[1], [0], [0], [1], [0, 0, 1, 1], [], []>} : vector<128x36xbf16>, vector<36x128xbf16>, vector<128x128xf32> -> vector<128x128xf32>
    %c0_12 = arith.constant 0 : index
    %c0_13 = arith.constant 0 : index
    %18 = vector.load %arg5[%c0_12, %c0_13] : memref<1x128xf32, #tpu.memory_space<vmem>>, vector<1x128xf32>
    %19 = vector.broadcast %18 : vector<1x128xf32> to vector<128x128xf32>
    %20 = arith.addf %17, %19 : vector<128x128xf32>
    %cst_14 = arith.constant 0.000000e+00 : f32
    %21 = vector.broadcast %cst_14 : f32 to vector<128x128xf32>
    %22 = arith.maximumf %20, %21 : vector<128x128xf32>
    %23 = arith.truncf %22 : vector<128x128xf32> to vector<128x128xbf16>
    %c0_15 = arith.constant 0 : index
    %c0_16 = arith.constant 0 : index
    %c0_17 = arith.constant 0 : index
    %24 = vector.load %arg6[%c0_15, %c0_16, %c0_17] : memref<1x128x128xbf16, #tpu.memory_space<vmem>>, vector<1x128x128xbf16>
    %25 = vector.shape_cast %24 : vector<1x128x128xbf16> to vector<128x128xbf16>
    %26 = vector.shape_cast %23 : vector<128x128xbf16> to vector<1x128x128xbf16>
    tpu.vector_store %arg6[%c0_15, %c0_16, %c0_17], %26 {strides = array<i32>} : memref<1x128x128xbf16, #tpu.memory_space<vmem>>, vector<1x128x128xbf16>,
    return
  }
  func.func @transform_1(%arg0: i32, %arg1: i32, %arg2: i32) -> (i32, i32) {
    %c0_i32 = arith.constant 0 : i32
    %c0_i32_0 = arith.constant 0 : i32
    return %c0_i32, %arg0 : i32, i32
  }
  func.func @transform_2(%arg0: i32, %arg1: i32, %arg2: i32) -> (i32, i32) {
    %c0_i32 = arith.constant 0 : i32
    %c0_i32_0 = arith.constant 0 : i32
    return %c0_i32, %arg0 : i32, i32
  }
  func.func @transform_3(%arg0: i32, %arg1: i32, %arg2: i32) -> (i32, i32, i32) {
    %c0_i32 = arith.constant 0 : i32
    return %arg1, %arg2, %arg0 : i32, i32, i32
  }
}

</mosaic_0001>

<llo_original>
// kernel: conv_bn_relu.1
$region0: #{conv_bn_relu.1}
  #allocation0 [shape = 'u32[]', space=smem, size = 0x4, offset = 0x4, fixed_abs, tag = 'smem constant byte address 0x4 - core index']
  #allocation1 [shape = 'u32[72,128]{1,0:T(1,128)}', space=vmem, size = 0x9000, scoped, tag = 'internal scratch']
  #allocation2 [shape = 'bf16[184,4]{1,0:T(8,128)(2,1)}', space=vmem, size = 0xb800, scoped, tag = 'scratch operand']
  #allocation3 [shape = 's32[1]{0}', space=sflag, size = 0x4, scoped, tag = 'scratch operand']
  #allocation4 [shape = 's32[]', space=sflag, size = 0x4, offset = 0, fixed_abs, tag = 'sflag constant byte address 0x0 - dummy sync flag']
  %s0 = inlined_call_operand.vmem [shape: bf16[880,4], index: 0, kind: input, shape index: {}]
  %s1 = inlined_call_operand.vmem [shape: bf16[36,128], index: 1, kind: input, shape index: {}]
  %s2 = inlined_call_operand.vmem [shape: f32[1,128], index: 2, kind: input, shape index: {}]
  %s3 = inlined_call_operand.vmem [shape: bf16[2,384,128], index: 3, kind: output, shape index: {}]
  %s4 = sld [smem:[#allocation0]]
  $region63: #{conv_bn_relu.1} parent=0
    _
  %s6 = ssub.s32 1, %s4
  %s7 = scalar_select 0, %s6, %s4
  loop: start=0, step=1, limit=8
  $region2: #{conv_bn_relu.1} parent=0 // loop_pre_header
    _
  $region3: #{conv_bn_relu.1} parent=0 // loop_header
    %s9 = sphi 0, %s13
    %p10 = scmp.ge.s32.totalorder %s9, 8
    %s16 = sphi 0, %s35
    %s17 = sphi 0, %s31
    %s18 = sphi 0, %s27
    %s19 = sphi 0, %s16
    %s20 = sphi 0, %s17
    %s21 = sphi 0, %s18
    %s22 = sphi 0, %s19
    %s23 = sphi 0, %s20
    %s24 = sphi 0, %s21
    %s38 = sphi 0, %s40
    %s41 = sphi 0, %s38
    %s42 = sphi 0, %s41
    %s58 = sphi 0, %s42
    %s64 = sphi 0, %s66
    %s67 = sphi 0, %s64
    %s68 = sphi 0, %s67
    %s84 = sphi 0, %s68
    %s94 = sphi 0, %s96
    %s97 = sphi 0, %s94
    %s98 = sphi 0, %s97
    %s114 = sphi 0, %s98
  $region4: #{conv_bn_relu.1} parent=0 // loop_header_branch
    %12 = sbr.rel (%p10) target = $region8
  $region5: #{conv_bn_relu.1} parent=0 // loop_body
    %s14 = ssub.s32 %s9, 1
    %s15 = ssub.s32 %s9, 2
    %s25 = sadd.s32 1, %s18
    %p26 = scmp.ge.s32.totalorder %s25, 3
    %s27 = scalar_select %p26, 0, %s25
    %s28 = sadd.s32 1, %s17
    %s29 = scalar_select %p26, %s28, %s17
    %p30 = scmp.ge.s32.totalorder %s29, 2
    %s31 = scalar_select %p30, 0, %s29
    %s32 = sadd.s32 1, %s16
    %s33 = scalar_select %p30, %s32, %s16
    %p34 = scmp.ge.s32.totalorder %s33, 1
    %s35 = scalar_select %p34, 0, %s33
    %s36 = ssub.s32 %s16, %s35
    %p37 = scmp.eq.s32.totalorder %s36, 0
    %s39 = sadd.s32 %s38, 1
    %s40 = scalar_select %p37, %s38, %s39
    %p43 = pneg %p37
    %p44 = scmp.eq.s32.totalorder %s9, 5
    %p45 = por %p43, %p44
    %p46 = scmp.ne.s32.totalorder %s38, %s41
    %p47 = scmp.eq.s32.totalorder %s9, 0
    %p48 = por %p46, %p47
    %p49 = scmp.ne.s32.totalorder %s38, %s41
    %p50 = scmp.eq.s32.totalorder %s14, 5
    %p51 = por %p49, %p50
    %p52 = scmp.ne.s32.totalorder %s41, %s42
    %p53 = scmp.eq.s32.totalorder %s14, 0
    %p54 = por %p52, %p53
    %p55 = scmp.ne.s32.totalorder %s41, %s42
    %p56 = scmp.eq.s32.totalorder %s15, 5
    %p57 = por %p55, %p56
    %p59 = scmp.ne.s32.totalorder %s42, %s58
    %p60 = scmp.eq.s32.totalorder %s15, 0
    %p61 = por %p59, %p60
    %s62 = ssub.s32 %s16, %s35
    %p63 = scmp.eq.s32.totalorder %s62, 0
    %s65 = sadd.s32 %s64, 1
    %s66 = scalar_select %p63, %s64, %s65
    %p69 = pneg %p63
    %p70 = scmp.eq.s32.totalorder %s9, 5
    %p71 = por %p69, %p70
    %p72 = scmp.ne.s32.totalorder %s64, %s67
    %p73 = scmp.eq.s32.totalorder %s9, 0
    %p74 = por %p72, %p73
    %p75 = scmp.ne.s32.totalorder %s64, %s67
    %p76 = scmp.eq.s32.totalorder %s14, 5
    %p77 = por %p75, %p76
    %p78 = scmp.ne.s32.totalorder %s67, %s68
    %p79 = scmp.eq.s32.totalorder %s14, 0
    %p80 = por %p78, %p79
    %p81 = scmp.ne.s32.totalorder %s67, %s68
    %p82 = scmp.eq.s32.totalorder %s15, 5
    %p83 = por %p81, %p82
    %p85 = scmp.ne.s32.totalorder %s68, %s84
    %p86 = scmp.eq.s32.totalorder %s15, 0
    %p87 = por %p85, %p86
    %s88 = ssub.s32 %s17, %s31
    %s89 = ssub.s32 %s18, %s27
    %s90 = sor.u32 %s88, %s89
    %s91 = ssub.s32 %s16, %s35
    %s92 = sor.u32 %s90, %s91
    %p93 = scmp.eq.s32.totalorder %s92, 0
    %s95 = sadd.s32 %s94, 1
    %s96 = scalar_select %p93, %s94, %s95
    %p99 = pneg %p93
    %p100 = scmp.eq.s32.totalorder %s9, 5
    %p101 = por %p99, %p100
    %p102 = scmp.ne.s32.totalorder %s94, %s97
    %p103 = scmp.eq.s32.totalorder %s9, 0
    %p104 = por %p102, %p103
    %p105 = scmp.ne.s32.totalorder %s94, %s97
    %p106 = scmp.eq.s32.totalorder %s14, 5
    %p107 = por %p105, %p106
    %p108 = scmp.ne.s32.totalorder %s97, %s98
    %p109 = scmp.eq.s32.totalorder %s14, 0
    %p110 = por %p108, %p109
    %p111 = scmp.ne.s32.totalorder %s97, %s98
    %p112 = scmp.eq.s32.totalorder %s15, 5
    %p113 = por %p111, %p112
    %p115 = scmp.ne.s32.totalorder %s98, %s114
    %p116 = scmp.eq.s32.totalorder %s15, 0
    %p117 = por %p115, %p116
    %p118 = scmp.le.s32.totalorder 1, %s9
    %p119 = scmp.lt.s32.totalorder %s9, 7
    %p120 = pnand %p118, %p119
    %p121 = pneg %p120
    // Predicated region
    $region9: #{conv_bn_relu.1} parent=5 // pred_check
      _
    $region10: #{conv_bn_relu.1} parent=5 // pred_check_branch
      %123 = sbr.rel (%p120) target = $region12
    $region11: #{conv_bn_relu.1} parent=5 // pred_region
      %s124 = ssub.s32 %s9, 1
      // Predicated region
      $region13: #{conv_bn_relu.1} parent=11 // pred_check
        %p125 = pneg %p54
      $region14: #{conv_bn_relu.1} parent=11 // pred_check_branch
        %127 = sbr.rel (%p125) target = $region16
      $region15: #{conv_bn_relu.1} parent=11 // pred_region
        %p128 = scmp.lt.s32.totalorder %s19, 0
        %s129 = scalar_select %p128, %s19, 0
        %s130 = smul.addr %s129, 4
        %s131 = scalar_lea.vmem %s1, %s130
      $region16: #{conv_bn_relu.1} parent=11 // pred_fallthru
        _
      // Predicated region
      $region17: #{conv_bn_relu.1} parent=11 // pred_check
        %p132 = pneg %p80
      $region18: #{conv_bn_relu.1} parent=11 // pred_check_branch
        %134 = sbr.rel (%p132) target = $region20
      $region19: #{conv_bn_relu.1} parent=11 // pred_region
        %p135 = scmp.lt.s32.totalorder %s19, 0
        %s136 = scalar_select %p135, %s19, 0
        %s137 = scalar_lea.vmem %s2, %s136
      $region20: #{conv_bn_relu.1} parent=11 // pred_fallthru
        _
    $region12: #{conv_bn_relu.1} parent=5 // pred_fallthru
      _
    %p138 = scmp.lt.s32.totalorder %s9, 6
    // Predicated region
    $region21: #{conv_bn_relu.1} parent=5 // pred_check
      %p139 = pneg %p138
    $region22: #{conv_bn_relu.1} parent=5 // pred_check_branch
      %141 = sbr.rel (%p139) target = $region24
    $region23: #{conv_bn_relu.1} parent=5 // pred_region
      _
    $region24: #{conv_bn_relu.1} parent=5 // pred_fallthru
      _
    %p142 = scmp.le.s32.totalorder 1, %s9
    %p143 = scmp.lt.s32.totalorder %s9, 7
    %p144 = pnand %p142, %p143
    %p145 = pneg %p144
    // Predicated region
    $region25: #{conv_bn_relu.1} parent=5 // pred_check
      _
    $region26: #{conv_bn_relu.1} parent=5 // pred_check_branch
      %147 = sbr.rel (%p144) target = $region28
    $region27: #{conv_bn_relu.1} parent=5 // pred_region
      %s148 = ssub.s32 %s9, 1
      %p149 = scmp.lt.s32.totalorder %s19, 0
      %s150 = scalar_select %p149, %s19, 0
      %s151 = smul.addr %s150, 4
      %s152 = scalar_lea.vmem %s1, %s151
      %p153 = pneg %p54
      %p154 = pneg %p51
      %p155 = scmp.lt.s32.totalorder %s19, 0
      %s156 = scalar_select %p155, %s19, 0
      %s157 = scalar_lea.vmem %s2, %s156
      %p158 = pneg %p80
      %p159 = pneg %p77
      %p160 = pneg %p110
      %p161 = pneg %p107
      %s162 = smul.u32 16, %s21
      %p163 = scmp.lt.s32.totalorder %s20, 1
      %s164 = scalar_select %p163, %s20, 1
      %p165 = scmp.lt.s32.totalorder %s162, 47
      %s166 = scalar_select %p165, %s162, 47
      %p167 = scmp.lt.s32.totalorder %s19, 0
      %s168 = scalar_select %p167, %s19, 0
      %s169 = sadd.s32 %s168, %s166
      %s170 = smul.addr %s164, 48
      %s171 = sadd.s32 %s169, %s170
      %s172 = smul.addr %s171, 4
      %s173 = scalar_lea.vmem %s3, %s172
      %p174 = scmp.lt.s32.totalorder %s19, 0
      %s175 = scalar_select %p174, %s19, 0
      %s176 = smul.addr %s175, 4
      %s177 = scalar_lea.vmem %s1, %s176
      %p178 = scmp.lt.s32.totalorder %s19, 0
      %s179 = scalar_select %p178, %s19, 0
      %s180 = scalar_lea.vmem %s2, %s179
      %s181 = smul.u32 16, %s21
      %p182 = scmp.lt.s32.totalorder %s20, 1
      %s183 = scalar_select %p182, %s20, 1
      %p184 = scmp.lt.s32.totalorder %s181, 47
      %s185 = scalar_select %p184, %s181, 47
      %p186 = scmp.lt.s32.totalorder %s19, 0
      %s187 = scalar_select %p186, %s19, 0
      %s188 = sadd.s32 %s187, %s185
      %s189 = smul.addr %s183, 48
      %s190 = sadd.s32 %s188, %s189
      %s191 = smul.addr %s190, 4
      %s192 = scalar_lea.vmem %s3, %s191
      %s193 = smul.u32 16, %s21
      %s195 = smul.u32 %s20, 440
      %s196 = smul.u32 %s21, 128
      %s197 = sadd.s32 %s195, %s196
      %s198 = sshra.s32 %s197, 3
      %s199 = sand.u32 %s197, 7
      %s200 = smul.addr %s198, 4
      %s201 = scalar_lea.vmem %s0, %s200
      // Predicated region
      $region29: #{conv_bn_relu.1} parent=27 // pred_check
        _
      $region30: #{conv_bn_relu.1} parent=27 // pred_check_branch
        %203 = sbr.rel (0) target = $region32
      $region31: #{conv_bn_relu.1} parent=27 // pred_region
        %s204 = scalar_lea.vmem %s201, 88
        %s205 = scalar_lea.vmem [#allocation2], 88
        loop: start=0, step=1, limit=1
        $region33: #{conv_bn_relu.1} parent=31 // loop_pre_header
          _
        $region34: #{conv_bn_relu.1} parent=31 // loop_header
          %s207 = sphi 0, %s211
          %p208 = scmp.ge.s32.totalorder %s207, 1
          %s212 = sphi %s201, %s201
          %s213 = sphi [#allocation2], [#allocation2]
        $region35: #{conv_bn_relu.1} parent=31 // loop_header_branch
          %210 = sbr.rel (%p208) target = $region39
        $region36: #{conv_bn_relu.1} parent=31 // loop_body
          %v214 = vld [vmem:[%s212] sm:$0xff]
          %215 = vst [vmem:[%s213] sm:$0xff] %v214
          %v216 = vld [vmem:[%s212 + $0x8] sm:$0xff]
          %217 = vst [vmem:[%s213 + $0x8] sm:$0xff] %v216
          %v218 = vld [vmem:[%s212 + $0x10] sm:$0xff]
          %219 = vst [vmem:[%s213 + $0x10] sm:$0xff] %v218
          %v220 = vld [vmem:[%s212 + $0x18] sm:$0xff]
          %221 = vst [vmem:[%s213 + $0x18] sm:$0xff] %v220
          %v222 = vld [vmem:[%s212 + $0x20] sm:$0xff]
          %223 = vst [vmem:[%s213 + $0x20] sm:$0xff] %v222
          %v224 = vld [vmem:[%s212 + $0x28] sm:$0xff]
          %225 = vst [vmem:[%s213 + $0x28] sm:$0xff] %v224
          %v226 = vld [vmem:[%s212 + $0x30] sm:$0xff]
          %227 = vst [vmem:[%s213 + $0x30] sm:$0xff] %v226
          %v228 = vld [vmem:[%s212 + $0x38] sm:$0xff]
          %229 = vst [vmem:[%s213 + $0x38] sm:$0xff] %v228
          %v230 = vld [vmem:[%s212 + $0x40] sm:$0xff]
          %231 = vst [vmem:[%s213 + $0x40] sm:$0xff] %v230
          %v232 = vld [vmem:[%s212 + $0x48] sm:$0xff]
          %233 = vst [vmem:[%s213 + $0x48] sm:$0xff] %v232
          %v234 = vld [vmem:[%s212 + $0x50] sm:$0xff]
          %235 = vst [vmem:[%s213 + $0x50] sm:$0xff] %v234
        $region37: #{conv_bn_relu.1} parent=31 // loop_footer
          %s211 = sadd.s32 1, %s207
        $region38: #{conv_bn_relu.1} parent=31 // loop_footer_branch
          %206 = sbr.rel target = $region34
        $region39: #{conv_bn_relu.1} parent=31 // loop_exit
          _
        %s237 = ssub.s32 16, 1
        loop: start=0, step=1, limit=1
        $region40: #{conv_bn_relu.1} parent=31 // loop_pre_header
          _
        $region41: #{conv_bn_relu.1} parent=31 // loop_header
          %s239 = sphi 0, %s243
          %p240 = scmp.ge.s32.totalorder %s239, 1
          %s244 = sphi %s204, %s204
          %s245 = sphi %s205, %s205
        $region42: #{conv_bn_relu.1} parent=31 // loop_header_branch
          %242 = sbr.rel (%p240) target = $region46
        $region43: #{conv_bn_relu.1} parent=31 // loop_body
          %v246 = vld [vmem:[%s244] sm:%s237]
          %247 = vst [vmem:[%s245] sm:%s237] %v246
        $region44: #{conv_bn_relu.1} parent=31 // loop_footer
          %s243 = sadd.s32 1, %s239
        $region45: #{conv_bn_relu.1} parent=31 // loop_footer_branch
          %238 = sbr.rel target = $region41
        $region46: #{conv_bn_relu.1} parent=31 // loop_exit
          _
      $region32: #{conv_bn_relu.1} parent=27 // pred_fallthru
        _
      // Predicated region
      $region47: #{conv_bn_relu.1} parent=27 // pred_check
        _
      $region48: #{conv_bn_relu.1} parent=27 // pred_check_branch
        %250 = sbr.rel (0) target = $region50
      $region49: #{conv_bn_relu.1} parent=27 // pred_region
        %251 = vsyncadd [#allocation3], 1472
      $region50: #{conv_bn_relu.1} parent=27 // pred_fallthru
        _
      %s252 = smul.u32 4, 23
      %s253 = smul.u32 %s252, 1
      %s254 = sshll.u32 %s253, 4
      %255 = dma.done [#allocation3], %s254
      %v256 = vld [vmem:[#allocation2] sm:$0xf]
      %v257 = vld [vmem:[#allocation2 + $0x4] sm:$0xf]
      %v258 = vld [vmem:[#allocation2 + $0x8] sm:$0xf]
      %v259 = vld [vmem:[#allocation2 + $0xc] sm:$0xf]
      %v260 = vld [vmem:[#allocation2 + $0x10] sm:$0xf]
      %v261 = vld [vmem:[#allocation2 + $0x14] sm:$0xf]
      %v262 = vld [vmem:[#allocation2 + $0x18] sm:$0xf]
      %v263 = vld [vmem:[#allocation2 + $0x1c] sm:$0xf]
      %v264 = vld [vmem:[#allocation2 + $0x20] sm:$0xf]
      %v265 = vld [vmem:[#allocation2 + $0x24] sm:$0xf]
      %v266 = vld [vmem:[#allocation2 + $0x28] sm:$0xf]
      %v267 = vld [vmem:[#allocation2 + $0x2c] sm:$0xf]
      %v268 = vld [vmem:[#allocation2 + $0x30] sm:$0xf]
      %v269 = vld [vmem:[#allocation2 + $0x34] sm:$0xf]
      %v270 = vld [vmem:[#allocation2 + $0x38] sm:$0xf]
      %v271 = vld [vmem:[#allocation2 + $0x3c] sm:$0xf]
      %v272 = vld [vmem:[#allocation2 + $0x40] sm:$0x1]
      %v273 = vld [vmem:[#allocation2] sm:$0xe]
      %v274 = vld [vmem:[#allocation2 + $0x40] sm:$0xf]
      %v275 = vld [vmem:[#allocation2 + $0x44] sm:$0xf]
      %v276 = vld [vmem:[#allocation2 + $0x48] sm:$0xf]
      %v277 = vld [vmem:[#allocation2 + $0x4c] sm:$0x1]
      %v278 = vld [vmem:[#allocation2 + $0xc] sm:$0xe]
      %v279 = vld [vmem:[#allocation2 + $0x4c] sm:$0xf]
      %v280 = vld [vmem:[#allocation2 + $0x50] sm:$0xf]
      %v281 = vld [vmem:[#allocation2 + $0x54] sm:$0xf]
      %v282 = vld [vmem:[#allocation2 + $0x58] sm:$0x1]
      %v283 = vld [vmem:[#allocation2 + $0x18] sm:$0xe]
      %v300 = vunpack.c.l.b16 %v256
      %v301 = vunpack.c.l.b16 %v257
      %v302 = vunpack.c.l.b16 %v258
      %v303 = vunpack.c.l.b16 %v259
      %v304 = vunpack.c.l.b16 %v260
      %v305 = vunpack.c.l.b16 %v261
      %v306 = vunpack.c.l.b16 %v262
      %v307 = vunpack.c.l.b16 %v263
      %v308 = vunpack.c.l.b16 %v264
      %v309 = vunpack.c.l.b16 %v265
      %v310 = vunpack.c.l.b16 %v266
      %v311 = vunpack.c.l.b16 %v267
      %v312 = vunpack.c.l.b16 %v268
      %v313 = vunpack.c.l.b16 %v269
      %v314 = vunpack.c.l.b16 %v270
      %v315 = vunpack.c.l.b16 %v271
      %v316 = vpack.c.b16 %v301, %v300
      %v317 = vpack.c.b16 %v303, %v302
      %v318 = vpack.c.b16 %v305, %v304
      %v319 = vpack.c.b16 %v307, %v306
      %v320 = vpack.c.b16 %v309, %v308
      %v321 = vpack.c.b16 %v311, %v310
      %v322 = vpack.c.b16 %v313, %v312
      %v323 = vpack.c.b16 %v315, %v314
      %v325 = vunpack.c.l.b16 %v272
      %v326 = vpack.c.b16 %v325, %v325
      %vm327 = vsmask.f32 7424
      %v329 = vshrl.u32 %v316, 16
      %v331 = vshll.u32 %v316, 16
      %v333 = vrot.slane %v331, 1
      %v334 = vor.u32 %v329, %v333
      %v336 = vshll.u32 %v317, 16
      %v338 = vrot.slane %v336, 1
      %v339 = vsel %vm327, %v334, %v338
      %v340 = vshrl.u32 %v317, 16
      %v342 = vor.u32 %v340, %v338
      %v344 = vshll.u32 %v318, 16
      %v346 = vrot.slane %v344, 1
      %v347 = vsel %vm327, %v342, %v346
      %v348 = vshrl.u32 %v318, 16
      %v350 = vor.u32 %v348, %v346
      %v352 = vshll.u32 %v319, 16
      %v354 = vrot.slane %v352, 1
      %v355 = vsel %vm327, %v350, %v354
      %v356 = vshrl.u32 %v319, 16
      %v358 = vor.u32 %v356, %v354
      %v360 = vshll.u32 %v320, 16
      %v362 = vrot.slane %v360, 1
      %v363 = vsel %vm327, %v358, %v362
      %v364 = vshrl.u32 %v320, 16
      %v366 = vor.u32 %v364, %v362
      %v368 = vshll.u32 %v321, 16
      %v370 = vrot.slane %v368, 1
      %v371 = vsel %vm327, %v366, %v370
      %v372 = vshrl.u32 %v321, 16
      %v374 = vor.u32 %v372, %v370
      %v376 = vshll.u32 %v322, 16
      %v378 = vrot.slane %v376, 1
      %v379 = vsel %vm327, %v374, %v378
      %v380 = vshrl.u32 %v322, 16
      %v382 = vor.u32 %v380, %v378
      %v384 = vshll.u32 %v323, 16
      %v386 = vrot.slane %v384, 1
      %v387 = vsel %vm327, %v382, %v386
      %v388 = vshrl.u32 %v323, 16
      %v390 = vor.u32 %v388, %v386
      %v392 = vshll.u32 %v326, 16
      %v394 = vrot.slane %v392, 1
      %v395 = vsel %vm327, %v390, %v394
      %396 = vrot.lane.b32.xlu0 %v339, 4
      %v397 = vpop.permute.xlu0 %396
      %398 = vrot.lane.b32.xlu0 %v347, 4
      %v399 = vpop.permute.xlu0 %398
      %400 = vrot.lane.b32.xlu0 %v355, 4
      %v401 = vpop.permute.xlu0 %400
      %402 = vrot.lane.b32.xlu0 %v363, 4
      %v403 = vpop.permute.xlu0 %402
      %404 = vrot.lane.b32.xlu0 %v371, 4
      %v405 = vpop.permute.xlu0 %404
      %406 = vrot.lane.b32.xlu0 %v379, 4
      %v407 = vpop.permute.xlu0 %406
      %408 = vrot.lane.b32.xlu0 %v387, 4
      %v409 = vpop.permute.xlu0 %408
      %410 = vrot.lane.b32.xlu0 %v395, 4
      %v411 = vpop.permute.xlu0 %410
      %v413 = vunpack.c.l.b16 %v273
      %v414 = vpack.c.b16 %v301, %v413
      %vm415 = vcmask 1046528
      %v416 = vrot.slane %v414, 1
      %v417 = vrot.slane %v317, 1
      %v418 = vsel %vm415, %v416, %v417
      %v419 = vrot.slane %v318, 1
      %v420 = vsel %vm415, %v417, %v419
      %v421 = vrot.slane %v319, 1
      %v422 = vsel %vm415, %v419, %v421
      %v423 = vrot.slane %v320, 1
      %v424 = vsel %vm415, %v421, %v423
      %v425 = vrot.slane %v321, 1
      %v426 = vsel %vm415, %v423, %v425
      %v427 = vrot.slane %v322, 1
      %v428 = vsel %vm415, %v425, %v427
      %v429 = vrot.slane %v323, 1
      %v430 = vsel %vm415, %v427, %v429
      %v431 = vrot.slane %v326, 1
      %v432 = vsel %vm415, %v429, %v431
      %433 = vrot.lane.b32.xlu0 %v418, 8
      %v434 = vpop.permute.xlu0 %433
      %435 = vrot.lane.b32.xlu0 %v420, 8
      %v436 = vpop.permute.xlu0 %435
      %437 = vrot.lane.b32.xlu0 %v422, 8
      %v438 = vpop.permute.xlu0 %437
      %439 = vrot.lane.b32.xlu0 %v424, 8
      %v440 = vpop.permute.xlu0 %439
      %441 = vrot.lane.b32.xlu0 %v426, 8
      %v442 = vpop.permute.xlu0 %441
      %443 = vrot.lane.b32.xlu0 %v428, 8
      %v444 = vpop.permute.xlu0 %443
      %445 = vrot.lane.b32.xlu0 %v430, 8
      %v446 = vpop.permute.xlu0 %445
      %447 = vrot.lane.b32.xlu0 %v432, 8
      %v448 = vpop.permute.xlu0 %447
      %v452 = vunpack.c.l.b16 %v274
      %v453 = vunpack.c.l.b16 %v275
      %v454 = vunpack.c.l.b16 %v276
      %v455 = vpack.c.b16 %v304, %v303
      %v456 = vpack.c.b16 %v306, %v305
      %v457 = vpack.c.b16 %v308, %v307
      %v458 = vpack.c.b16 %v310, %v309
      %v459 = vpack.c.b16 %v312, %v311
      %v460 = vpack.c.b16 %v314, %v313
      %v461 = vpack.c.b16 %v452, %v315
      %v462 = vpack.c.b16 %v454, %v453
      %463 = vrot.lane.b32.xlu0 %v455, 12
      %v464 = vpop.permute.xlu0 %463
      %465 = vrot.lane.b32.xlu0 %v456, 12
      %v466 = vpop.permute.xlu0 %465
      %467 = vrot.lane.b32.xlu0 %v457, 12
      %v468 = vpop.permute.xlu0 %467
      %469 = vrot.lane.b32.xlu0 %v458, 12
      %v470 = vpop.permute.xlu0 %469
      %471 = vrot.lane.b32.xlu0 %v459, 12
      %v472 = vpop.permute.xlu0 %471
      %473 = vrot.lane.b32.xlu0 %v460, 12
      %v474 = vpop.permute.xlu0 %473
      %475 = vrot.lane.b32.xlu0 %v461, 12
      %v476 = vpop.permute.xlu0 %475
      %477 = vrot.lane.b32.xlu0 %v462, 12
      %v478 = vpop.permute.xlu0 %477
      %v480 = vunpack.c.l.b16 %v277
      %v481 = vpack.c.b16 %v480, %v480
      %v483 = vshrl.u32 %v455, 16
      %v485 = vshll.u32 %v455, 16
      %v487 = vrot.slane %v485, 1
      %v488 = vor.u32 %v483, %v487
      %v490 = vshll.u32 %v456, 16
      %v492 = vrot.slane %v490, 1
      %v493 = vsel %vm327, %v488, %v492
      %v494 = vshrl.u32 %v456, 16
      %v496 = vor.u32 %v494, %v492
      %v498 = vshll.u32 %v457, 16
      %v500 = vrot.slane %v498, 1
      %v501 = vsel %vm327, %v496, %v500
      %v502 = vshrl.u32 %v457, 16
      %v504 = vor.u32 %v502, %v500
      %v506 = vshll.u32 %v458, 16
      %v508 = vrot.slane %v506, 1
      %v509 = vsel %vm327, %v504, %v508
      %v510 = vshrl.u32 %v458, 16
      %v512 = vor.u32 %v510, %v508
      %v514 = vshll.u32 %v459, 16
      %v516 = vrot.slane %v514, 1
      %v517 = vsel %vm327, %v512, %v516
      %v518 = vshrl.u32 %v459, 16
      %v520 = vor.u32 %v518, %v516
      %v522 = vshll.u32 %v460, 16
      %v524 = vrot.slane %v522, 1
      %v525 = vsel %vm327, %v520, %v524
      %v526 = vshrl.u32 %v460, 16
      %v528 = vor.u32 %v526, %v524
      %v530 = vshll.u32 %v461, 16
      %v532 = vrot.slane %v530, 1
      %v533 = vsel %vm327, %v528, %v532
      %v534 = vshrl.u32 %v461, 16
      %v536 = vor.u32 %v534, %v532
      %v538 = vshll.u32 %v462, 16
      %v540 = vrot.slane %v538, 1
      %v541 = vsel %vm327, %v536, %v540
      %v542 = vshrl.u32 %v462, 16
      %v544 = vor.u32 %v542, %v540
      %v546 = vshll.u32 %v481, 16
      %v548 = vrot.slane %v546, 1
      %v549 = vsel %vm327, %v544, %v548
      %550 = vrot.lane.b32.xlu0 %v493, 16
      %v551 = vpop.permute.xlu0 %550
      %552 = vrot.lane.b32.xlu0 %v501, 16
      %v553 = vpop.permute.xlu0 %552
      %554 = vrot.lane.b32.xlu0 %v509, 16
      %v555 = vpop.permute.xlu0 %554
      %556 = vrot.lane.b32.xlu0 %v517, 16
      %v557 = vpop.permute.xlu0 %556
      %558 = vrot.lane.b32.xlu0 %v525, 16
      %v559 = vpop.permute.xlu0 %558
      %560 = vrot.lane.b32.xlu0 %v533, 16
      %v561 = vpop.permute.xlu0 %560
      %562 = vrot.lane.b32.xlu0 %v541, 16
      %v563 = vpop.permute.xlu0 %562
      %564 = vrot.lane.b32.xlu0 %v549, 16
      %v565 = vpop.permute.xlu0 %564
      %v567 = vunpack.c.l.b16 %v278
      %v568 = vpack.c.b16 %v304, %v567
      %v569 = vrot.slane %v568, 1
      %v570 = vrot.slane %v456, 1
      %v571 = vsel %vm415, %v569, %v570
      %v572 = vrot.slane %v457, 1
      %v573 = vsel %vm415, %v570, %v572
      %v574 = vrot.slane %v458, 1
      %v575 = vsel %vm415, %v572, %v574
      %v576 = vrot.slane %v459, 1
      %v577 = vsel %vm415, %v574, %v576
      %v578 = vrot.slane %v460, 1
      %v579 = vsel %vm415, %v576, %v578
      %v580 = vrot.slane %v461, 1
      %v581 = vsel %vm415, %v578, %v580
      %v582 = vrot.slane %v462, 1
      %v583 = vsel %vm415, %v580, %v582
      %v584 = vrot.slane %v481, 1
      %v585 = vsel %vm415, %v582, %v584
      %586 = vrot.lane.b32.xlu0 %v571, 20
      %v587 = vpop.permute.xlu0 %586
      %588 = vrot.lane.b32.xlu0 %v573, 20
      %v589 = vpop.permute.xlu0 %588
      %590 = vrot.lane.b32.xlu0 %v575, 20
      %v591 = vpop.permute.xlu0 %590
      %592 = vrot.lane.b32.xlu0 %v577, 20
      %v593 = vpop.permute.xlu0 %592
      %594 = vrot.lane.b32.xlu0 %v579, 20
      %v595 = vpop.permute.xlu0 %594
      %596 = vrot.lane.b32.xlu0 %v581, 20
      %v597 = vpop.permute.xlu0 %596
      %598 = vrot.lane.b32.xlu0 %v583, 20
      %v599 = vpop.permute.xlu0 %598
      %600 = vrot.lane.b32.xlu0 %v585, 20
      %v601 = vpop.permute.xlu0 %600
      %v605 = vunpack.c.l.b16 %v279
      %v606 = vunpack.c.l.b16 %v280
      %v607 = vunpack.c.l.b16 %v281
      %v608 = vpack.c.b16 %v453, %v452
      %v609 = vpack.c.b16 %v605, %v454
      %v610 = vpack.c.b16 %v607, %v606
      %611 = vrot.lane.b32.xlu0 %v319, 24
      %v612 = vpop.permute.xlu0 %611
      %613 = vrot.lane.b32.xlu0 %v320, 24
      %v614 = vpop.permute.xlu0 %613
      %615 = vrot.lane.b32.xlu0 %v321, 24
      %v616 = vpop.permute.xlu0 %615
      %617 = vrot.lane.b32.xlu0 %v322, 24
      %v618 = vpop.permute.xlu0 %617
      %619 = vrot.lane.b32.xlu0 %v323, 24
      %v620 = vpop.permute.xlu0 %619
      %621 = vrot.lane.b32.xlu0 %v608, 24
      %v622 = vpop.permute.xlu0 %621
      %623 = vrot.lane.b32.xlu0 %v609, 24
      %v624 = vpop.permute.xlu0 %623
      %625 = vrot.lane.b32.xlu0 %v610, 24
      %v626 = vpop.permute.xlu0 %625
      %v628 = vunpack.c.l.b16 %v282
      %v629 = vpack.c.b16 %v628, %v628
      %v631 = vshll.u32 %v608, 16
      %v633 = vrot.slane %v631, 1
      %v634 = vsel %vm327, %v390, %v633
      %v635 = vshrl.u32 %v608, 16
      %v637 = vor.u32 %v635, %v633
      %v639 = vshll.u32 %v609, 16
      %v641 = vrot.slane %v639, 1
      %v642 = vsel %vm327, %v637, %v641
      %v643 = vshrl.u32 %v609, 16
      %v645 = vor.u32 %v643, %v641
      %v647 = vshll.u32 %v610, 16
      %v649 = vrot.slane %v647, 1
      %v650 = vsel %vm327, %v645, %v649
      %v651 = vshrl.u32 %v610, 16
      %v653 = vor.u32 %v651, %v649
      %v655 = vshll.u32 %v629, 16
      %v657 = vrot.slane %v655, 1
      %v658 = vsel %vm327, %v653, %v657
      %659 = vrot.lane.b32.xlu0 %v363, 28
      %v660 = vpop.permute.xlu0 %659
      %661 = vrot.lane.b32.xlu0 %v371, 28
      %v662 = vpop.permute.xlu0 %661
      %663 = vrot.lane.b32.xlu0 %v379, 28
      %v664 = vpop.permute.xlu0 %663
      %665 = vrot.lane.b32.xlu0 %v387, 28
      %v666 = vpop.permute.xlu0 %665
      %667 = vrot.lane.b32.xlu0 %v634, 28
      %v668 = vpop.permute.xlu0 %667
      %669 = vrot.lane.b32.xlu0 %v642, 28
      %v670 = vpop.permute.xlu0 %669
      %671 = vrot.lane.b32.xlu0 %v650, 28
      %v672 = vpop.permute.xlu0 %671
      %673 = vrot.lane.b32.xlu0 %v658, 28
      %v674 = vpop.permute.xlu0 %673
      %v676 = vunpack.c.l.b16 %v283
      %v677 = vpack.c.b16 %v307, %v676
      %v678 = vrot.slane %v677, 1
      %v679 = vsel %vm415, %v678, %v423
      %v680 = vrot.slane %v608, 1
      %v681 = vsel %vm415, %v429, %v680
      %v682 = vrot.slane %v609, 1
      %v683 = vsel %vm415, %v680, %v682
      %v684 = vrot.slane %v610, 1
      %v685 = vsel %vm415, %v682, %v684
      %v686 = vrot.slane %v629, 1
      %v687 = vsel %vm415, %v684, %v686
      %688 = vrot.lane.b32.xlu0 %v679, 32
      %v689 = vpop.permute.xlu0 %688
      %690 = vrot.lane.b32.xlu0 %v426, 32
      %v691 = vpop.permute.xlu0 %690
      %692 = vrot.lane.b32.xlu0 %v428, 32
      %v693 = vpop.permute.xlu0 %692
      %694 = vrot.lane.b32.xlu0 %v430, 32
      %v695 = vpop.permute.xlu0 %694
      %696 = vrot.lane.b32.xlu0 %v681, 32
      %v697 = vpop.permute.xlu0 %696
      %698 = vrot.lane.b32.xlu0 %v683, 32
      %v699 = vpop.permute.xlu0 %698
      %700 = vrot.lane.b32.xlu0 %v685, 32
      %v701 = vpop.permute.xlu0 %700
      %702 = vrot.lane.b32.xlu0 %v687, 32
      %v703 = vpop.permute.xlu0 %702
      %vm704 = vcmask 31744
      %v706 = vsel %vm704, %v316, %v397
      %v708 = vsel %vm704, %v317, %v399
      %v710 = vsel %vm704, %v318, %v401
      %v712 = vsel %vm704, %v319, %v403
      %v714 = vsel %vm704, %v320, %v405
      %v716 = vsel %vm704, %v321, %v407
      %v718 = vsel %vm704, %v322, %v409
      %v720 = vsel %vm704, %v323, %v411
      %vm721 = vcmask 64512
      %v723 = vsel %vm721, %v706, %v434
      %v725 = vsel %vm721, %v708, %v436
      %v727 = vsel %vm721, %v710, %v438
      %v729 = vsel %vm721, %v712, %v440
      %v731 = vsel %vm721, %v714, %v442
      %v733 = vsel %vm721, %v716, %v444
      %v735 = vsel %vm721, %v718, %v446
      %v737 = vsel %vm721, %v720, %v448
      %vm738 = vcmask 97280
      %v740 = vsel %vm738, %v723, %v464
      %v742 = vsel %vm738, %v725, %v466
      %v744 = vsel %vm738, %v727, %v468
      %v746 = vsel %vm738, %v729, %v470
      %v748 = vsel %vm738, %v731, %v472
      %v750 = vsel %vm738, %v733, %v474
      %v752 = vsel %vm738, %v735, %v476
      %v754 = vsel %vm738, %v737, %v478
      %vm755 = vcmask 130048
      %v757 = vsel %vm755, %v740, %v551
      %v759 = vsel %vm755, %v742, %v553
      %v761 = vsel %vm755, %v744, %v555
      %v763 = vsel %vm755, %v746, %v557
      %v765 = vsel %vm755, %v748, %v559
      %v767 = vsel %vm755, %v750, %v561
      %v769 = vsel %vm755, %v752, %v563
      %v771 = vsel %vm755, %v754, %v565
      %vm772 = vcmask 162816
      %v774 = vsel %vm772, %v757, %v587
      %v776 = vsel %vm772, %v759, %v589
      %v778 = vsel %vm772, %v761, %v591
      %v780 = vsel %vm772, %v763, %v593
      %v782 = vsel %vm772, %v765, %v595
      %v784 = vsel %vm772, %v767, %v597
      %v786 = vsel %vm772, %v769, %v599
      %v788 = vsel %vm772, %v771, %v601
      %vm789 = vcmask 195584
      %v791 = vsel %vm789, %v774, %v612
      %v793 = vsel %vm789, %v776, %v614
      %v795 = vsel %vm789, %v778, %v616
      %v797 = vsel %vm789, %v780, %v618
      %v799 = vsel %vm789, %v782, %v620
      %v801 = vsel %vm789, %v784, %v622
      %v803 = vsel %vm789, %v786, %v624
      %v805 = vsel %vm789, %v788, %v626
      %vm806 = vcmask 228352
      %v808 = vsel %vm806, %v791, %v660
      %v810 = vsel %vm806, %v793, %v662
      %v812 = vsel %vm806, %v795, %v664
      %v814 = vsel %vm806, %v797, %v666
      %v816 = vsel %vm806, %v799, %v668
      %v818 = vsel %vm806, %v801, %v670
      %v820 = vsel %vm806, %v803, %v672
      %v822 = vsel %vm806, %v805, %v674
      %vm823 = vcmask 261120
      %v825 = vsel %vm823, %v808, %v689
      %v827 = vsel %vm823, %v810, %v691
      %v829 = vsel %vm823, %v812, %v693
      %v831 = vsel %vm823, %v814, %v695
      %v833 = vsel %vm823, %v816, %v697
      %v835 = vsel %vm823, %v818, %v699
      %v837 = vsel %vm823, %v820, %v701
      %v839 = vsel %vm823, %v822, %v703
      %v840 = vld [vmem:[%s177] sm:$0xf]
      %v841 = vld [vmem:[%s177 + $0x4] sm:$0xf]
      %v842 = vld [vmem:[%s177 + $0x8] sm:$0xf]
      %v843 = vld [vmem:[%s177 + $0xc] sm:$0xf]
      %v844 = vld [vmem:[%s177 + $0x10] sm:$0x3]
      %v845 = vld [vmem:[%s180] sm:$0x1]
      %v847 = vperm.slane %v845, 0
      %v854 = vunpack.c.l.b16 %v840
      %v855 = vunpack.c.l.b16 %v841
      %v856 = vunpack.c.l.b16 %v842
      %v857 = vunpack.c.l.b16 %v843
      %v858 = vunpack.c.l.b16 %v844
      %v859 = vpack.c.b16 %v855, %v854
      %v860 = vpack.c.b16 %v857, %v856
      %v861 = vpack.c.b16 %v858, %v858
      %vm864 = vcmask 293888
      %v865 = vsel %vm864, %v825, 0
      %v867 = vsel %vm864, %v827, 0
      %v869 = vsel %vm864, %v829, 0
      %v871 = vsel %vm864, %v831, 0
      %v873 = vsel %vm864, %v833, 0
      %v875 = vsel %vm864, %v835, 0
      %v877 = vsel %vm864, %v837, 0
      %v879 = vsel %vm864, %v839, 0
      %vm881 = vcmask 1041408
      %v883 = vsel %vm881, %v861, 0
      %885 = vmatpush.bf16.msra.mxu0 0
      %886 = vmatpush.bf16.msra.mxu0 0
      %887 = vmatpush.bf16.msra.mxu0 0
      %888 = vmatpush.bf16.msra.mxu0 0
      %889 = vmatpush.bf16.msra.mxu0 0
      %890 = vmatpush.bf16.msra.mxu0 %v883
      %891 = vmatpush.bf16.msra.mxu0 %v860
      %892 = vmatpush.bf16.msra.mxu0 %v859
      %893 = vmatmul.bf16.gmra.mxu0 %v865
      %v894 = vpop.f32.mrf.mxu0
      %v895 = vadd.f32 %v847, %v894
      %v896 = vpop.f32.mrf.mxu0
      %v897 = vadd.f32 %v847, %v896
      %898 = vmatmul.bf16.gmra.mxu0 %v867
      %v899 = vpop.f32.mrf.mxu0
      %v900 = vadd.f32 %v847, %v899
      %v901 = vpop.f32.mrf.mxu0
      %v902 = vadd.f32 %v847, %v901
      %903 = vmatmul.bf16.gmra.mxu0 %v869
      %v904 = vpop.f32.mrf.mxu0
      %v905 = vadd.f32 %v847, %v904
      %v906 = vpop.f32.mrf.mxu0
      %v907 = vadd.f32 %v847, %v906
      %908 = vmatmul.bf16.gmra.mxu0 %v871
      %v909 = vpop.f32.mrf.mxu0
      %v910 = vadd.f32 %v847, %v909
      %v911 = vpop.f32.mrf.mxu0
      %v912 = vadd.f32 %v847, %v911
      %913 = vmatmul.bf16.gmra.mxu0 %v873
      %v914 = vpop.f32.mrf.mxu0
      %v915 = vadd.f32 %v847, %v914
      %v916 = vpop.f32.mrf.mxu0
      %v917 = vadd.f32 %v847, %v916
      %918 = vmatmul.bf16.gmra.mxu0 %v875
      %v919 = vpop.f32.mrf.mxu0
      %v920 = vadd.f32 %v847, %v919
      %v921 = vpop.f32.mrf.mxu0
      %v922 = vadd.f32 %v847, %v921
      %923 = vmatmul.bf16.gmra.mxu0 %v877
      %v924 = vpop.f32.mrf.mxu0
      %v925 = vadd.f32 %v847, %v924
      %v926 = vpop.f32.mrf.mxu0
      %v927 = vadd.f32 %v847, %v926
      %928 = vmatmul.bf16.gmra.mxu0 %v879
      %v929 = vpop.f32.mrf.mxu0
      %v930 = vadd.f32 %v847, %v929
      %v931 = vpop.f32.mrf.mxu0
      %v932 = vadd.f32 %v847, %v931
      %933 = vdwg.mxu0
      %v934 = vmax.f32 %v895, 0.0
      %v935 = vmax.f32 %v897, 0.0
      %v936 = vmax.f32 %v900, 0.0
      %v937 = vmax.f32 %v902, 0.0
      %v938 = vmax.f32 %v905, 0.0
      %v939 = vmax.f32 %v907, 0.0
      %v940 = vmax.f32 %v910, 0.0
      %v941 = vmax.f32 %v912, 0.0
      %v942 = vmax.f32 %v915, 0.0
      %v943 = vmax.f32 %v917, 0.0
      %v944 = vmax.f32 %v920, 0.0
      %v945 = vmax.f32 %v922, 0.0
      %v946 = vmax.f32 %v925, 0.0
      %v947 = vmax.f32 %v927, 0.0
      %v948 = vmax.f32 %v930, 0.0
      %v949 = vmax.f32 %v932, 0.0
      %v950 = vpack.c.bf16 %v934, %v934
      %v951 = vpack.c.bf16 %v935, %v935
      %v952 = vpack.c.bf16 %v936, %v936
      %v953 = vpack.c.bf16 %v937, %v937
      %v954 = vpack.c.bf16 %v938, %v938
      %v955 = vpack.c.bf16 %v939, %v939
      %v956 = vpack.c.bf16 %v940, %v940
      %v957 = vpack.c.bf16 %v941, %v941
      %v958 = vpack.c.bf16 %v942, %v942
      %v959 = vpack.c.bf16 %v943, %v943
      %v960 = vpack.c.bf16 %v944, %v944
      %v961 = vpack.c.bf16 %v945, %v945
      %v962 = vpack.c.bf16 %v946, %v946
      %v963 = vpack.c.bf16 %v947, %v947
      %v964 = vpack.c.bf16 %v948, %v948
      %v965 = vpack.c.bf16 %v949, %v949
      %966 = vst [vmem:[%s192] sm:$0xf] %v950
      %967 = vst [vmem:[%s192 + $0x4] sm:$0xf] %v951
      %968 = vst [vmem:[%s192 + $0x8] sm:$0xf] %v952
      %969 = vst [vmem:[%s192 + $0xc] sm:$0xf] %v953
      %970 = vst [vmem:[%s192 + $0x10] sm:$0xf] %v954
      %971 = vst [vmem:[%s192 + $0x14] sm:$0xf] %v955
      %972 = vst [vmem:[%s192 + $0x18] sm:$0xf] %v956
      %973 = vst [vmem:[%s192 + $0x1c] sm:$0xf] %v957
      %974 = vst [vmem:[%s192 + $0x20] sm:$0xf] %v958
      %975 = vst [vmem:[%s192 + $0x24] sm:$0xf] %v959
      %976 = vst [vmem:[%s192 + $0x28] sm:$0xf] %v960
      %977 = vst [vmem:[%s192 + $0x2c] sm:$0xf] %v961
      %978 = vst [vmem:[%s192 + $0x30] sm:$0xf] %v962
      %979 = vst [vmem:[%s192 + $0x34] sm:$0xf] %v963
      %980 = vst [vmem:[%s192 + $0x38] sm:$0xf] %v964
      %981 = vst [vmem:[%s192 + $0x3c] sm:$0xf] %v965
      %s982 = smul.u32 16, %s21
      %p983 = scmp.lt.s32.totalorder %s20, 1
      %s984 = scalar_select %p983, %s20, 1
      %p985 = scmp.lt.s32.totalorder %s982, 47
      %s986 = scalar_select %p985, %s982, 47
      %p987 = scmp.lt.s32.totalorder %s19, 0
      %s988 = scalar_select %p987, %s19, 0
      %s989 = sadd.s32 %s988, %s986
      %s990 = smul.addr %s984, 48
      %s991 = sadd.s32 %s989, %s990
      %s992 = smul.addr %s991, 4
      %s993 = scalar_lea.vmem %s3, %s992
      // Predicated region
      $region51: #{conv_bn_relu.1} parent=27 // pred_check
        %p994 = pneg %p107
      $region52: #{conv_bn_relu.1} parent=27 // pred_check_branch
        %996 = sbr.rel (%p994) target = $region54
      $region53: #{conv_bn_relu.1} parent=27 // pred_region
        %s997 = smul.u32 16, %s21
      $region54: #{conv_bn_relu.1} parent=27 // pred_fallthru
        _
    $region28: #{conv_bn_relu.1} parent=5 // pred_fallthru
      _
    %p998 = scmp.le.s32.totalorder 2, %s9
    // Predicated region
    $region55: #{conv_bn_relu.1} parent=5 // pred_check
      %p999 = pneg %p998
    $region56: #{conv_bn_relu.1} parent=5 // pred_check_branch
      %1001 = sbr.rel (%p999) target = $region58
    $region57: #{conv_bn_relu.1} parent=5 // pred_region
      %s1002 = ssub.s32 %s9, 2
      // Predicated region
      $region59: #{conv_bn_relu.1} parent=57 // pred_check
        %p1003 = pneg %p113
      $region60: #{conv_bn_relu.1} parent=57 // pred_check_branch
        %1005 = sbr.rel (%p1003) target = $region62
      $region61: #{conv_bn_relu.1} parent=57 // pred_region
        %s1006 = smul.u32 16, %s24
        %p1007 = scmp.lt.s32.totalorder %s23, 1
        %s1008 = scalar_select %p1007, %s23, 1
        %p1009 = scmp.lt.s32.totalorder %s1006, 47
        %s1010 = scalar_select %p1009, %s1006, 47
        %p1011 = scmp.lt.s32.totalorder %s22, 0
        %s1012 = scalar_select %p1011, %s22, 0
        %s1013 = sadd.s32 %s1012, %s1010
        %s1014 = smul.addr %s1008, 48
        %s1015 = sadd.s32 %s1013, %s1014
        %s1016 = smul.addr %s1015, 4
        %s1017 = scalar_lea.vmem %s3, %s1016
      $region62: #{conv_bn_relu.1} parent=57 // pred_fallthru
        _
    $region58: #{conv_bn_relu.1} parent=5 // pred_fallthru
      _
  $region6: #{conv_bn_relu.1} parent=0 // loop_footer
    %s13 = sadd.s32 1, %s9
  $region7: #{conv_bn_relu.1} parent=0 // loop_footer_branch
    %8 = sbr.rel target = $region3
  $region8: #{conv_bn_relu.1} parent=0 // loop_exit
    _
  %1018 = vsyncmov [#allocation3]
  %s1019 = vpop.sfrf %1018
  %p1020 = scmp.eq.s32.totalorder %s1019, 0
  %p1021 = pneg %p1020
  %1023 = shalt.err (%p1021)

</llo_original>
